<compile_context>
chip_gen: v6e
topology: v6e:2x2x1
jax: 0.10.0
libtpu: 0.0.40
codegen_flags: <defaults>
</compile_context>

<pallas_src>
import functools
import math

import jax
import jax.numpy as jnp
import numpy as np
from jax import lax
from jax.experimental import pallas as pl
from jax.experimental.pallas import tpu as pltpu


# ----------------------------------------------------------------------------
# Kernel 1: per batch  RMSNorm-scale -> QKV matmul -> masked multi-head SDPA
#           emits the NATURAL attention output O = P @ V, shape (hidden, HW)
# ----------------------------------------------------------------------------
def _rms_qkv_attn_kernel(x_ref, wqkv_ref, bias_ref, o_ref, *, scale):
    x = x_ref[0]                                                  # (C, HW) f32

    # RMSNorm: g*sqrt(C) is folded into wqkv; only the per-position 1/||x|| remains.
    ss = jnp.sum(x * x, axis=0, keepdims=True)                    # (1, HW) f32
    inv_l2 = lax.rsqrt(jnp.maximum(ss, 1e-24))                    # == 1/max(||x||, 1e-12)
    y = (x * inv_l2).astype(jnp.bfloat16)                         # (C, HW) bf16

    # 1x1 conv == channel matmul (bf16 MXU operands, f32 accumulate).
    w = wqkv_ref[...]                                             # (3*hidden, C) bf16
    qkv = jnp.dot(w, y, preferred_element_type=jnp.float32)       # (3*hidden, HW) f32
    hidden = w.shape[0] // 3
    q = qkv[:hidden].astype(jnp.bfloat16)                         # (hidden, HW)
    k = qkv[hidden:2 * hidden].astype(jnp.bfloat16)               # (hidden, HW)
    v = qkv[2 * hidden:].astype(jnp.bfloat16)                     # (hidden, HW)

    # All heads in ONE score matmul; cross-head blocks get a -1e30 additive bias.
    s = lax.dot_general(q, k, (((1,), (1,)), ((), ())),
                        preferred_element_type=jnp.float32)       # (hidden, hidden)
    s = s * scale + bias_ref[...]
    s = s - jnp.max(s, axis=-1, keepdims=True)
    p = jnp.exp(s)
    p = p * pl.reciprocal(jnp.sum(p, axis=-1, keepdims=True), approx=True)

    # One value matmul for all heads (block-diag zeros in p kill cross-head terms).
    o = jnp.dot(p.astype(jnp.bfloat16), v,
                preferred_element_type=jnp.float32)               # (hidden, HW) f32
    o_ref[0] = o.astype(o_ref.dtype)                              # lane-dense store


# ----------------------------------------------------------------------------
# Kernel 2: per batch  1x1 output conv (bf16 MXU) + bias + residual add
# ----------------------------------------------------------------------------
def _out_proj_residual_kernel(t_ref, x_ref, wout_ref, bout_ref, o_ref):
    t = t_ref[0]                                                  # (hidden, HW) bf16
    w = wout_ref[...]                                             # (C, hidden) bf16
    out = jnp.dot(w, t, preferred_element_type=jnp.float32)       # (C, HW) f32
    o_ref[0] = out + bout_ref[...] + x_ref[0]


# ----------------------------------------------------------------------------
# Wrapper
# ----------------------------------------------------------------------------
@functools.partial(jax.jit, static_argnames=("n_heads", "dim_head"))
def attention_forward(x, params, n_heads, dim_head):
    B, C, H, W = x.shape
    HW = H * W
    hidden = n_heads * dim_head
    assert dim_head == C, "torch's view(bs, n_heads, channel, h*w) requires dim_head == dim"
    assert C % 8 == 0 and HW % 128 == 0  # TODO(synk): pad in the wrapper otherwise.

    # Fold RMSNorm's  g * sqrt(C)  (per-input-channel column scale) into the QKV weight.
    col_scale = params["g"].reshape(1, C).astype(jnp.float32) * jnp.float32(math.sqrt(C))
    wqkv = (params["wqkv"].astype(jnp.float32) * col_scale).astype(jnp.bfloat16)
    wout = params["wout"].astype(jnp.bfloat16)
    bout = params["bout"].reshape(C, 1).astype(jnp.float32)
    x_flat = x.reshape(B, C, HW).astype(jnp.float32)

    # Block-diagonal head mask built ONCE (numpy, compile-time constant operand).
    hh = np.arange(hidden) // dim_head
    mask_bias = jnp.asarray(
        np.where(hh[:, None] == hh[None, :], 0.0, -1e30).astype(np.float32))

    scale = 1.0 / math.sqrt(HW)  # SDPA scale: E = HW here (q's last dim).
    # Per-step VMEM is tiny (tens of KB double-buffered); 32 MiB is safe on v5e/v6e/v7x.
    cparams = pltpu.CompilerParams(dimension_semantics=("parallel",),
                                   vmem_limit_bytes=32 * 1024 * 1024)

    o_nat = pl.pallas_call(
        functools.partial(_rms_qkv_attn_kernel, scale=scale),
        out_shape=jax.ShapeDtypeStruct((B, hidden, HW), jnp.bfloat16),
        grid=(B,),
        in_specs=[
            pl.BlockSpec((1, C, HW), lambda b: (b, 0, 0)),
            pl.BlockSpec((3 * hidden, C), lambda b: (0, 0)),
            pl.BlockSpec((hidden, hidden), lambda b: (0, 0)),
        ],
        out_specs=pl.BlockSpec((1, hidden, HW), lambda b: (b, 0, 0)),
        compiler_params=cparams,
    )(x_flat, wqkv, mask_bias)

    # torch:  out.permute(0,1,3,2).contiguous().view(B, hidden, H, W)
    # Done as a tiny XLA transpose on the bf16 intermediate (per-head lane relayout has
    # no cheap in-kernel Mosaic equivalent -- see TODO(synk) in the header).
    t = (o_nat.reshape(B, n_heads, dim_head, HW)
              .transpose(0, 1, 3, 2)
              .reshape(B, hidden, HW))

    out = pl.pallas_call(
        _out_proj_residual_kernel,
        out_shape=jax.ShapeDtypeStruct((B, C, HW), jnp.float32),
        grid=(B,),
        in_specs=[
            pl.BlockSpec((1, hidden, HW), lambda b: (b, 0, 0)),
            pl.BlockSpec((1, C, HW), lambda b: (b, 0, 0)),
            pl.BlockSpec((C, hidden), lambda b: (0, 0)),
            pl.BlockSpec((C, 1), lambda b: (0, 0)),
        ],
        out_specs=pl.BlockSpec((1, C, HW), lambda b: (b, 0, 0)),
        compiler_params=cparams,
        # NOTE: input_output_aliases={1: 0} would let the residual reuse x's HBM buffer,
        # but is only safe when the caller donates x; omitted to avoid clobbering x.
    )(t, x_flat, wout, bout)

    return out.reshape(B, C, H, W)


# ----------------------------------------------------------------------------
# Pure-JAX f32 reference (mirrors the torch forward exactly)
# ----------------------------------------------------------------------------
def reference(x, params, n_heads):
    B, C, H, W = x.shape
    HW = H * W
    wqkv, wout = params["wqkv"], params["wout"]
    hidden = wqkv.shape[0] // 3

    nrm = jnp.sqrt(jnp.sum(x * x, axis=1, keepdims=True))
    y = x / jnp.maximum(nrm, 1e-12) * params["g"].reshape(1, C, 1, 1) * jnp.sqrt(jnp.float32(C))

    yf = y.reshape(B, C, HW)
    qkv = jnp.einsum("oc,bcs->bos", wqkv, yf)
    q, k, v = jnp.split(qkv, 3, axis=1)
    q = q.reshape(B, n_heads, C, HW)
    k = k.reshape(B, n_heads, C, HW)
    v = v.reshape(B, n_heads, C, HW)

    scale = 1.0 / jnp.sqrt(jnp.float32(HW))
    s = jnp.einsum("bhce,bhde->bhcd", q, k) * scale
    p = jax.nn.softmax(s, axis=-1)
    o = jnp.einsum("bhcd,bhde->bhce", p, v)                    # (B, nh, C, HW)

    o = jnp.transpose(o, (0, 1, 3, 2)).reshape(B, hidden, HW)  # permute + view
    out = jnp.einsum("oc,bcs->bos", wout, o) + params["bout"].reshape(1, C, 1)
    return out.reshape(B, C, H, W) + x


if __name__ == "__main__":
    B, dim, n_heads, H, W = 2, 8, 2, 16, 16
    dim_head = dim                      # required by the torch view (see NOTE above)
    hidden = n_heads * dim_head

    key = jax.random.PRNGKey(0)
    kx, kq, ko, kb = jax.random.split(key, 4)
    x = jax.random.normal(kx, (B, dim, H, W), jnp.float32)
    params = {
        "g": jnp.ones((dim,), jnp.float32),                                   # RMSNorm.g init
        "wqkv": jax.random.normal(kq, (3 * hidden, dim), jnp.float32) * 0.1,  # to_qkv weight
        "wout": jax.random.normal(ko, (dim, hidden), jnp.float32) * 0.1,      # to_out weight
        "bout": jax.random.normal(kb, (dim,), jnp.float32) * 0.1,             # to_out bias
    }

    out = jax.block_until_ready(
        attention_forward(x, params, n_heads=n_heads, dim_head=dim_head))
    ref = reference(x, params, n_heads)
    # bf16 MXU operands + bf16 intermediate + approx softmax reciprocal -> loose tolerance.
    np.testing.assert_allclose(np.asarray(out), np.asarray(ref), rtol=2e-2, atol=2e-2)
    print("KERNEL_OK")
</pallas_src>

<mosaic_0001>
module attributes {stable_mosaic.version = 11 : i64} {
  func.func @_rms_qkv_attn_kernel(%arg0: i32, %arg1: memref<1x8x256xf32, #tpu.memory_space<vmem>>, %arg2: memref<48x8xbf16, #tpu.memory_space<vmem>>, %arg3: memref<16x16xf32, #tpu.memory_space<vmem>>, %arg4: memref<1x16x256xbf16, #tpu.memory_space<vmem>>) attributes {dimension_semantics = [#tpu.dimension_semantics<parallel>], iteration_bounds = array<i64: 2>, scalar_prefetch = 0 : i64, scratch_operands = 0 : i64, tpu.core_type = #tpu.core_type<tc>, window_params = [{transform_indices = @transform_0, window_bounds = array<i64: 1, 8, 256>}, {pipeline_mode = #tpu.pipeline_mode<synchronous>, transform_indices = @transform_1, window_bounds = array<i64: 48, 8>}, {pipeline_mode = #tpu.pipeline_mode<synchronous>, transform_indices = @transform_2, window_bounds = array<i64: 16, 16>}, {transform_indices = @transform_3, window_bounds = array<i64: 1, 16, 256>}]} {
    %c0 = arith.constant 0 : index
    %c0_0 = arith.constant 0 : index
    %c0_1 = arith.constant 0 : index
    %0 = vector.load %arg1[%c0, %c0_0, %c0_1] : memref<1x8x256xf32, #tpu.memory_space<vmem>>, vector<1x8x256xf32>
    %1 = vector.shape_cast %0 : vector<1x8x256xf32> to vector<8x256xf32>
    %2 = arith.mulf %1, %1 : vector<8x256xf32>
    %cst = arith.constant dense<0.000000e+00> : vector<256xf32>
    %3 = vector.multi_reduction <add>, %2, %cst [0] : vector<8x256xf32> to vector<256xf32>
    %4 = vector.shape_cast %3 : vector<256xf32> to vector<1x256xf32>
    %cst_2 = arith.constant 1.000000e-24 : f32
    %5 = vector.broadcast %cst_2 : f32 to vector<1x256xf32>
    %6 = arith.maximumf %4, %5 : vector<1x256xf32>
    %7 = math.rsqrt %6 : vector<1x256xf32>
    %8 = vector.broadcast %7 : vector<1x256xf32> to vector<8x256xf32>
    %9 = arith.mulf %1, %8 : vector<8x256xf32>
    %10 = arith.truncf %9 : vector<8x256xf32> to vector<8x256xbf16>
    %c0_3 = arith.constant 0 : index
    %c0_4 = arith.constant 0 : index
    %11 = vector.load %arg2[%c0_3, %c0_4] : memref<48x8xbf16, #tpu.memory_space<vmem>>, vector<48x8xbf16>
    %cst_5 = arith.constant dense<0.000000e+00> : vector<48x256xf32>
    %12 = tpu.matmul %11, %10, %cst_5 {dimension_numbers = #tpu.dot_dimension_numbers<[1], [0], [0], [1], [0, 0, 1, 1], [], []>} : vector<48x8xbf16>, vector<8x256xbf16>, vector<48x256xf32> -> vector<48x256xf32>
    %13 = vector.extract_strided_slice %12 {offsets = [0, 0], sizes = [16, 256], strides = [1, 1]} : vector<48x256xf32> to vector<16x256xf32>
    %14 = arith.truncf %13 : vector<16x256xf32> to vector<16x256xbf16>
    %15 = vector.extract_strided_slice %12 {offsets = [16, 0], sizes = [16, 256], strides = [1, 1]} : vector<48x256xf32> to vector<16x256xf32>
    %16 = arith.truncf %15 : vector<16x256xf32> to vector<16x256xbf16>
    %17 = vector.extract_strided_slice %12 {offsets = [32, 0], sizes = [16, 256], strides = [1, 1]} : vector<48x256xf32> to vector<16x256xf32>
    %18 = arith.truncf %17 : vector<16x256xf32> to vector<16x256xbf16>
    %cst_6 = arith.constant dense<0.000000e+00> : vector<16x16xf32>
    %19 = tpu.matmul %14, %16, %cst_6 {dimension_numbers = #tpu.dot_dimension_numbers<[1], [1], [0], [0], [0, 0, 1, 0], [], []>} : vector<16x256xbf16>, vector<16x256xbf16>, vector<16x16xf32> -> vector<16x16xf32>
    %cst_7 = arith.constant 6.250000e-02 : f32
    %20 = vector.broadcast %cst_7 : f32 to vector<16x16xf32>
    %21 = arith.mulf %19, %20 : vector<16x16xf32>
    %c0_8 = arith.constant 0 : index
    %c0_9 = arith.constant 0 : index
    %22 = vector.load %arg3[%c0_8, %c0_9] : memref<16x16xf32, #tpu.memory_space<vmem>>, vector<16x16xf32>
    %23 = arith.addf %21, %22 : vector<16x16xf32>
    %cst_10 = arith.constant dense<0xFF800000> : vector<16xf32>
    %24 = vector.multi_reduction <maximumf>, %23, %cst_10 [1] : vector<16x16xf32> to vector<16xf32>
    %25 = vector.shape_cast %24 : vector<16xf32> to vector<16x1xf32>
    %26 = vector.broadcast %25 : vector<16x1xf32> to vector<16x16xf32>
    %27 = arith.subf %23, %26 : vector<16x16xf32>
    %28 = math.exp %27 : vector<16x16xf32>
    %cst_11 = arith.constant dense<0.000000e+00> : vector<16xf32>
    %29 = vector.multi_reduction <add>, %28, %cst_11 [1] : vector<16x16xf32> to vector<16xf32>
    %30 = vector.shape_cast %29 : vector<16xf32> to vector<16x1xf32>
    %31 = tpu.reciprocal %30 {approx = true} : vector<16x1xf32> -> vector<16x1xf32>
    %32 = vector.broadcast %31 : vector<16x1xf32> to vector<16x16xf32>
    %33 = arith.mulf %28, %32 : vector<16x16xf32>
    %34 = arith.truncf %33 : vector<16x16xf32> to vector<16x16xbf16>
    %cst_12 = arith.constant dense<0.000000e+00> : vector<16x256xf32>
    %35 = tpu.matmul %34, %18, %cst_12 {dimension_numbers = #tpu.dot_dimension_numbers<[1], [0], [0], [1], [0, 0, 1, 1], [], []>} : vector<16x16xbf16>, vector<16x256xbf16>, vector<16x256xf32> -> vector<16x256xf32>
    %36 = arith.truncf %35 : vector<16x256xf32> to vector<16x256xbf16>
    %c0_13 = arith.constant 0 : index
    %c0_14 = arith.constant 0 : index
    %c0_15 = arith.constant 0 : index
    %37 = vector.load %arg4[%c0_13, %c0_14, %c0_15] : memref<1x16x256xbf16, #tpu.memory_space<vmem>>, vector<1x16x256xbf16>
    %38 = vector.shape_cast %37 : vector<1x16x256xbf16> to vector<16x256xbf16>
    %39 = vector.shape_cast %36 : vector<16x256xbf16> to vector<1x16x256xbf16>
    tpu.vector_store %arg4[%c0_13, %c0_14, %c0_15], %39 {strides = array<i32>} : memref<1x16x256xbf16, #tpu.memory_space<vmem>>, vector<1x16x256xbf16>,
    return
  }
  func.func @transform_0(%arg0: i32) -> (i32, i32, i32) {
    %c0_i32 = arith.constant 0 : i32
    %c0_i32_0 = arith.constant 0 : i32
    %c0_i32_1 = arith.constant 0 : i32
    return %arg0, %c0_i32, %c0_i32_0 : i32, i32, i32
  }
  func.func @transform_1(%arg0: i32) -> (i32, i32) {
    %c0_i32 = arith.constant 0 : i32
    %c0_i32_0 = arith.constant 0 : i32
    %c0_i32_1 = arith.constant 0 : i32
    return %c0_i32, %c0_i32_0 : i32, i32
  }
  func.func @transform_2(%arg0: i32) -> (i32, i32) {
    %c0_i32 = arith.constant 0 : i32
    %c0_i32_0 = arith.constant 0 : i32
    %c0_i32_1 = arith.constant 0 : i32
    return %c0_i32, %c0_i32_0 : i32, i32
  }
  func.func @transform_3(%arg0: i32) -> (i32, i32, i32) {
    %c0_i32 = arith.constant 0 : i32
    %c0_i32_0 = arith.constant 0 : i32
    %c0_i32_1 = arith.constant 0 : i32
    return %arg0, %c0_i32, %c0_i32_0 : i32, i32, i32
  }
}

module attributes {stable_mosaic.version = 11 : i64} {
  func.func @_out_proj_residual_kernel(%arg0: i32, %arg1: memref<1x16x256xbf16, #tpu.memory_space<vmem>>, %arg2: memref<1x8x256xf32, #tpu.memory_space<vmem>>, %arg3: memref<8x16xbf16, #tpu.memory_space<vmem>>, %arg4: memref<8x1xf32, #tpu.memory_space<vmem>>, %arg5: memref<1x8x256xf32, #tpu.memory_space<vmem>>) attributes {dimension_semantics = [#tpu.dimension_semantics<parallel>], iteration_bounds = array<i64: 2>, scalar_prefetch = 0 : i64, scratch_operands = 0 : i64, tpu.core_type = #tpu.core_type<tc>, window_params = [{transform_indices = @transform_0, window_bounds = array<i64: 1, 16, 256>}, {transform_indices = @transform_1, window_bounds = array<i64: 1, 8, 256>}, {pipeline_mode = #tpu.pipeline_mode<synchronous>, transform_indices = @transform_2, window_bounds = array<i64: 8, 16>}, {pipeline_mode = #tpu.pipeline_mode<synchronous>, transform_indices = @transform_3, window_bounds = array<i64: 8, 1>}, {transform_indices = @transform_4, window_bounds = array<i64: 1, 8, 256>}]} {
    %c0 = arith.constant 0 : index
    %c0_0 = arith.constant 0 : index
    %c0_1 = arith.constant 0 : index
    %0 = vector.load %arg1[%c0, %c0_0, %c0_1] : memref<1x16x256xbf16, #tpu.memory_space<vmem>>, vector<1x16x256xbf16>
    %1 = vector.shape_cast %0 : vector<1x16x256xbf16> to vector<16x256xbf16>
    %c0_2 = arith.constant 0 : index
    %c0_3 = arith.constant 0 : index
    %2 = vector.load %arg3[%c0_2, %c0_3] : memref<8x16xbf16, #tpu.memory_space<vmem>>, vector<8x16xbf16>
    %cst = arith.constant dense<0.000000e+00> : vector<8x256xf32>
    %3 = tpu.matmul %2, %1, %cst {dimension_numbers = #tpu.dot_dimension_numbers<[1], [0], [0], [1], [0, 0, 1, 1], [], []>} : vector<8x16xbf16>, vector<16x256xbf16>, vector<8x256xf32> -> vector<8x256xf32>
    %c0_4 = arith.constant 0 : index
    %c0_5 = arith.constant 0 : index
    %4 = vector.load %arg4[%c0_4, %c0_5] : memref<8x1xf32, #tpu.memory_space<vmem>>, vector<8x1xf32>
    %5 = vector.broadcast %4 : vector<8x1xf32> to vector<8x256xf32>
    %6 = arith.addf %3, %5 : vector<8x256xf32>
    %c0_6 = arith.constant 0 : index
    %c0_7 = arith.constant 0 : index
    %c0_8 = arith.constant 0 : index
    %7 = vector.load %arg2[%c0_6, %c0_7, %c0_8] : memref<1x8x256xf32, #tpu.memory_space<vmem>>, vector<1x8x256xf32>
    %8 = vector.shape_cast %7 : vector<1x8x256xf32> to vector<8x256xf32>
    %9 = arith.addf %6, %8 : vector<8x256xf32>
    %c0_9 = arith.constant 0 : index
    %c0_10 = arith.constant 0 : index
    %c0_11 = arith.constant 0 : index
    %10 = vector.load %arg5[%c0_9, %c0_10, %c0_11] : memref<1x8x256xf32, #tpu.memory_space<vmem>>, vector<1x8x256xf32>
    %11 = vector.shape_cast %10 : vector<1x8x256xf32> to vector<8x256xf32>
    %12 = vector.shape_cast %9 : vector<8x256xf32> to vector<1x8x256xf32>
    tpu.vector_store %arg5[%c0_9, %c0_10, %c0_11], %12 {strides = array<i32>} : memref<1x8x256xf32, #tpu.memory_space<vmem>>, vector<1x8x256xf32>,
    return
  }
  func.func @transform_0(%arg0: i32) -> (i32, i32, i32) {
    %c0_i32 = arith.constant 0 : i32
    %c0_i32_0 = arith.constant 0 : i32
    %c0_i32_1 = arith.constant 0 : i32
    return %arg0, %c0_i32, %c0_i32_0 : i32, i32, i32
  }
  func.func @transform_1(%arg0: i32) -> (i32, i32, i32) {
    %c0_i32 = arith.constant 0 : i32
    %c0_i32_0 = arith.constant 0 : i32
    %c0_i32_1 = arith.constant 0 : i32
    return %arg0, %c0_i32, %c0_i32_0 : i32, i32, i32
  }
  func.func @transform_2(%arg0: i32) -> (i32, i32) {
    %c0_i32 = arith.constant 0 : i32
    %c0_i32_0 = arith.constant 0 : i32
    %c0_i32_1 = arith.constant 0 : i32
    return %c0_i32, %c0_i32_0 : i32, i32
  }
  func.func @transform_3(%arg0: i32) -> (i32, i32) {
    %c0_i32 = arith.constant 0 : i32
    %c0_i32_0 = arith.constant 0 : i32
    %c0_i32_1 = arith.constant 0 : i32
    return %c0_i32, %c0_i32_0 : i32, i32
  }
  func.func @transform_4(%arg0: i32) -> (i32, i32, i32) {
    %c0_i32 = arith.constant 0 : i32
    %c0_i32_0 = arith.constant 0 : i32
    %c0_i32_1 = arith.constant 0 : i32
    return %arg0, %c0_i32, %c0_i32_0 : i32, i32, i32
  }
}

</mosaic_0001>

<llo_original>
// kernel: attention_forward.2
$region0: #{attention_forward.2}
  #allocation0 [shape = 'u32[]', space=smem, size = 0x4, offset = 0x4, fixed_abs, tag = 'smem constant byte address 0x4 - core index']
  #allocation1 [shape = 'u32[144,128]{1,0:T(1,128)}', space=vmem, size = 0x12000, scoped, tag = 'internal scratch']
  %s0 = inlined_call_operand.vmem [shape: f32[2,8,256], index: 0, kind: input, shape index: {}]
  %s1 = inlined_call_operand.vmem [shape: bf16[48,8], index: 1, kind: input, shape index: {}]
  %s2 = inlined_call_operand.vmem [shape: f32[16,16], index: 2, kind: input, shape index: {}]
  %s3 = inlined_call_operand.vmem [shape: bf16[2,16,256], index: 3, kind: output, shape index: {}]
  %s4 = sld [smem:[#allocation0]]
  $region45: #{attention_forward.2} parent=0
    _
  %s6 = ssub.s32 1, %s4
  %s7 = scalar_select 0, %s6, %s4
  loop: start=0, step=1, limit=4
  $region2: #{attention_forward.2} parent=0 // loop_pre_header
    _
  $region3: #{attention_forward.2} parent=0 // loop_header
    %s9 = sphi 0, %s13
    %p10 = scmp.ge.s32.totalorder %s9, 4
    %s19 = sphi 0, %s21
    %s22 = sphi 0, %s19
    %s23 = sphi 0, %s22
    %s39 = sphi 0, %s23
    %s43 = sphi 0, %s43
    %s45 = sphi 0, %s43
    %s46 = sphi 0, %s45
    %s60 = sphi 0, %s46
    %s64 = sphi 0, %s64
    %s66 = sphi 0, %s64
    %s67 = sphi 0, %s66
    %s81 = sphi 0, %s67
    %s87 = sphi 0, %s89
    %s90 = sphi 0, %s87
    %s91 = sphi 0, %s90
    %s107 = sphi 0, %s91
  $region4: #{attention_forward.2} parent=0 // loop_header_branch
    %12 = sbr.rel (%p10) target = $region8
  $region5: #{attention_forward.2} parent=0 // loop_body
    %s14 = ssub.s32 %s9, 1
    %s15 = ssub.s32 %s9, 2
    %s16 = sadd.s32 %s9, 1
    %s17 = ssub.s32 %s9, %s16
    %p18 = scmp.eq.s32.totalorder %s17, 0
    %s20 = sadd.s32 %s19, 1
    %s21 = scalar_select %p18, %s19, %s20
    %p24 = pneg %p18
    %p25 = scmp.eq.s32.totalorder %s9, 1
    %p26 = por %p24, %p25
    %p27 = scmp.ne.s32.totalorder %s19, %s22
    %p28 = scmp.eq.s32.totalorder %s9, 0
    %p29 = por %p27, %p28
    %p30 = scmp.ne.s32.totalorder %s19, %s22
    %p31 = scmp.eq.s32.totalorder %s14, 1
    %p32 = por %p30, %p31
    %p33 = scmp.ne.s32.totalorder %s22, %s23
    %p34 = scmp.eq.s32.totalorder %s14, 0
    %p35 = por %p33, %p34
    %p36 = scmp.ne.s32.totalorder %s22, %s23
    %p37 = scmp.eq.s32.totalorder %s15, 1
    %p38 = por %p36, %p37
    %p40 = scmp.ne.s32.totalorder %s23, %s39
    %p41 = scmp.eq.s32.totalorder %s15, 0
    %p42 = por %p40, %p41
    %s44 = sadd.s32 %s43, 1
    %p47 = scmp.eq.s32.totalorder %s9, 1
    %p48 = scmp.ne.s32.totalorder %s43, %s45
    %p49 = scmp.eq.s32.totalorder %s9, 0
    %p50 = por %p48, %p49
    %p51 = scmp.ne.s32.totalorder %s43, %s45
    %p52 = scmp.eq.s32.totalorder %s14, 1
    %p53 = por %p51, %p52
    %p54 = scmp.ne.s32.totalorder %s45, %s46
    %p55 = scmp.eq.s32.totalorder %s14, 0
    %p56 = por %p54, %p55
    %p57 = scmp.ne.s32.totalorder %s45, %s46
    %p58 = scmp.eq.s32.totalorder %s15, 1
    %p59 = por %p57, %p58
    %p61 = scmp.ne.s32.totalorder %s46, %s60
    %p62 = scmp.eq.s32.totalorder %s15, 0
    %p63 = por %p61, %p62
    %s65 = sadd.s32 %s64, 1
    %p68 = scmp.eq.s32.totalorder %s9, 1
    %p69 = scmp.ne.s32.totalorder %s64, %s66
    %p70 = scmp.eq.s32.totalorder %s9, 0
    %p71 = por %p69, %p70
    %p72 = scmp.ne.s32.totalorder %s64, %s66
    %p73 = scmp.eq.s32.totalorder %s14, 1
    %p74 = por %p72, %p73
    %p75 = scmp.ne.s32.totalorder %s66, %s67
    %p76 = scmp.eq.s32.totalorder %s14, 0
    %p77 = por %p75, %p76
    %p78 = scmp.ne.s32.totalorder %s66, %s67
    %p79 = scmp.eq.s32.totalorder %s15, 1
    %p80 = por %p78, %p79
    %p82 = scmp.ne.s32.totalorder %s67, %s81
    %p83 = scmp.eq.s32.totalorder %s15, 0
    %p84 = por %p82, %p83
    %s85 = ssub.s32 %s9, %s16
    %p86 = scmp.eq.s32.totalorder %s85, 0
    %s88 = sadd.s32 %s87, 1
    %s89 = scalar_select %p86, %s87, %s88
    %p92 = pneg %p86
    %p93 = scmp.eq.s32.totalorder %s9, 1
    %p94 = por %p92, %p93
    %p95 = scmp.ne.s32.totalorder %s87, %s90
    %p96 = scmp.eq.s32.totalorder %s9, 0
    %p97 = por %p95, %p96
    %p98 = scmp.ne.s32.totalorder %s87, %s90
    %p99 = scmp.eq.s32.totalorder %s14, 1
    %p100 = por %p98, %p99
    %p101 = scmp.ne.s32.totalorder %s90, %s91
    %p102 = scmp.eq.s32.totalorder %s14, 0
    %p103 = por %p101, %p102
    %p104 = scmp.ne.s32.totalorder %s90, %s91
    %p105 = scmp.eq.s32.totalorder %s15, 1
    %p106 = por %p104, %p105
    %p108 = scmp.ne.s32.totalorder %s91, %s107
    %p109 = scmp.eq.s32.totalorder %s15, 0
    %p110 = por %p108, %p109
    %p111 = scmp.le.s32.totalorder 1, %s9
    %p112 = scmp.lt.s32.totalorder %s9, 3
    %p113 = pnand %p111, %p112
    %p114 = pneg %p113
    // Predicated region
    $region9: #{attention_forward.2} parent=5 // pred_check
      _
    $region10: #{attention_forward.2} parent=5 // pred_check_branch
      %116 = sbr.rel (%p113) target = $region12
    $region11: #{attention_forward.2} parent=5 // pred_region
      %s117 = ssub.s32 %s9, 1
      // Predicated region
      $region13: #{attention_forward.2} parent=11 // pred_check
        %p118 = pneg %p56
      $region14: #{attention_forward.2} parent=11 // pred_check_branch
        %120 = sbr.rel (%p118) target = $region16
      $region15: #{attention_forward.2} parent=11 // pred_region
        _
      $region16: #{attention_forward.2} parent=11 // pred_fallthru
        _
      // Predicated region
      $region17: #{attention_forward.2} parent=11 // pred_check
        %p121 = pneg %p77
      $region18: #{attention_forward.2} parent=11 // pred_check_branch
        %123 = sbr.rel (%p121) target = $region20
      $region19: #{attention_forward.2} parent=11 // pred_region
        _
      $region20: #{attention_forward.2} parent=11 // pred_fallthru
        _
    $region12: #{attention_forward.2} parent=5 // pred_fallthru
      _
    %p124 = scmp.lt.s32.totalorder %s9, 2
    // Predicated region
    $region21: #{attention_forward.2} parent=5 // pred_check
      %p125 = pneg %p124
    $region22: #{attention_forward.2} parent=5 // pred_check_branch
      %127 = sbr.rel (%p125) target = $region24
    $region23: #{attention_forward.2} parent=5 // pred_region
      // Predicated region
      $region25: #{attention_forward.2} parent=23 // pred_check
        %p128 = pneg %p29
      $region26: #{attention_forward.2} parent=23 // pred_check_branch
        %130 = sbr.rel (%p128) target = $region28
      $region27: #{attention_forward.2} parent=23 // pred_region
        %p131 = scmp.lt.s32.totalorder %s9, 1
        %s132 = scalar_select %p131, %s9, 1
        %s133 = smul.addr %s132, 2
        %s134 = smul.addr %s133, 8
        %s135 = scalar_lea.vmem %s0, %s134
      $region28: #{attention_forward.2} parent=23 // pred_fallthru
        _
    $region24: #{attention_forward.2} parent=5 // pred_fallthru
      _
    %p136 = scmp.le.s32.totalorder 1, %s9
    %p137 = scmp.lt.s32.totalorder %s9, 3
    %p138 = pnand %p136, %p137
    %p139 = pneg %p138
    // Predicated region
    $region29: #{attention_forward.2} parent=5 // pred_check
      _
    $region30: #{attention_forward.2} parent=5 // pred_check_branch
      %141 = sbr.rel (%p138) target = $region32
    $region31: #{attention_forward.2} parent=5 // pred_region
      %s142 = ssub.s32 %s9, 1
      %p143 = scmp.lt.s32.totalorder %s14, 1
      %s144 = scalar_select %p143, %s14, 1
      %s145 = smul.addr %s144, 2
      %s146 = smul.addr %s145, 8
      %s147 = scalar_lea.vmem %s0, %s146
      %p148 = pneg %p35
      %p149 = pneg %p32
      %p150 = pneg %p56
      %p151 = pneg %p53
      %p152 = pneg %p77
      %p153 = pneg %p74
      %p154 = pneg %p103
      %p155 = pneg %p100
      %p156 = scmp.lt.s32.totalorder %s14, 1
      %s157 = scalar_select %p156, %s14, 1
      %s158 = smul.addr %s157, 4
      %s159 = smul.addr %s158, 4
      %s160 = scalar_lea.vmem %s3, %s159
      %p161 = scmp.lt.s32.totalorder %s14, 1
      %s162 = scalar_select %p161, %s14, 1
      %s163 = smul.addr %s162, 2
      %s164 = smul.addr %s163, 8
      %s165 = scalar_lea.vmem %s0, %s164
      %p166 = scmp.lt.s32.totalorder %s14, 1
      %s167 = scalar_select %p166, %s14, 1
      %s168 = smul.addr %s167, 4
      %s169 = smul.addr %s168, 4
      %s170 = scalar_lea.vmem %s3, %s169
      %v172 = vld [vmem:[%s165] sm:$0xff]
      %v173 = vld [vmem:[%s165 + $0x8] sm:$0xff]
      %v174 = vmul.f32 %v172, %v172
      %v175 = vmul.f32 %v173, %v173
      %v176 = vrot.slane %v174, 4
      %v177 = vadd.f32 %v174, %v176
      %v178 = vrot.slane %v177, 2
      %v179 = vadd.f32 %v177, %v178
      %v180 = vrot.slane %v179, 1
      %v181 = vadd.f32 %v179, %v180
      %v182 = vrot.slane %v175, 4
      %v183 = vadd.f32 %v175, %v182
      %v184 = vrot.slane %v183, 2
      %v185 = vadd.f32 %v183, %v184
      %v186 = vrot.slane %v185, 1
      %v187 = vadd.f32 %v185, %v186
      %v188 = vmax.f32 %v181, 1e-24
      %v189 = vmax.f32 %v187, 1e-24
      %v190 = vrsqrt.pop %v188
      %v191 = vrsqrt.pop %v189
      %v192 = vmul.f32 %v172, %v190
      %v193 = vmul.f32 %v173, %v191
      %v194 = vpack.c.bf16 %v192, %v192
      %v195 = vpack.c.bf16 %v193, %v193
      %v196 = vld [vmem:[%s1] sm:$0xf]
      %v197 = vld [vmem:[%s1 + $0x4] sm:$0xf]
      %v198 = vld [vmem:[%s1 + $0x8] sm:$0xf]
      %v199 = vld [vmem:[%s1 + $0xc] sm:$0xf]
      %v200 = vld [vmem:[%s1 + $0x10] sm:$0xf]
      %v201 = vld [vmem:[%s1 + $0x14] sm:$0xf]
      %v208 = vunpack.c.l.b16 %v196
      %v209 = vunpack.c.l.b16 %v197
      %v210 = vunpack.c.l.b16 %v198
      %v211 = vunpack.c.l.b16 %v199
      %v212 = vunpack.c.l.b16 %v200
      %v213 = vunpack.c.l.b16 %v201
      %v214 = vpack.c.b16 %v209, %v208
      %v215 = vpack.c.b16 %v211, %v210
      %v216 = vpack.c.b16 %v213, %v212
      %vm217 = vcmask 64512
      %v219 = vsel %vm217, %v214, 0
      %v222 = vsel %vm217, %v215, 0
      %v225 = vsel %vm217, %v216, 0
      %vm227 = vcmask 1043456
      %v229 = vsel %vm227, %v194, 0
      %v232 = vsel %vm227, %v195, 0
      %234 = vmatprep.subr.bf16.mxu0 0
      %235 = vmatpush1.bf16.msra.mxu0 0
      %236 = vmatprep.subr.bf16.mxu0 0
      %237 = vmatpush1.bf16.msra.mxu0 0
      %238 = vmatprep.subr.bf16.mxu0 0
      %239 = vmatpush1.bf16.msra.mxu0 0
      %240 = vmatprep.subr.bf16.mxu0 0
      %241 = vmatpush1.bf16.msra.mxu0 0
      %242 = vmatprep.subr.bf16.mxu0 0
      %243 = vmatpush1.bf16.msra.mxu0 0
      %244 = vmatprep.subr.bf16.mxu0 0
      %245 = vmatpush1.bf16.msra.mxu0 0
      %246 = vmatprep.subr.bf16.mxu0 0
      %247 = vmatpush1.bf16.msra.mxu0 0
      %248 = vmatprep.subr.bf16.mxu0 %v232
      %249 = vmatpush1.bf16.msra.mxu0 %v229
      %250 = vmatprep.subr.bf16.mxu0 0
      %251 = vmatpush2.bf16.msra.mxu0 0
      %252 = vmatprep.subr.bf16.mxu0 0
      %253 = vmatpush2.bf16.msra.mxu0 0
      %254 = vmatprep.subr.bf16.mxu0 0
      %255 = vmatpush2.bf16.msra.mxu0 0
      %256 = vmatprep.subr.bf16.mxu0 0
      %257 = vmatpush2.bf16.msra.mxu0 0
      %258 = vmatprep.subr.bf16.mxu0 0
      %259 = vmatpush2.bf16.msra.mxu0 0
      %260 = vmatprep.subr.bf16.mxu0 0
      %261 = vmatpush2.bf16.msra.mxu0 0
      %262 = vmatprep.subr.bf16.mxu0 0
      %263 = vmatpush2.bf16.msra.mxu0 0
      %264 = vmatprep.subr.bf16.mxu0 0
      %265 = vmatpush2.bf16.msra.mxu0 0
      %266 = vmatprep.mubr.bf16.mxu0 0
      %267 = vmatmul.mubr.bf16.gmra.mxu0 %v219
      %v268 = vpop.f32.mrf.mxu0
      %v269 = vadd.f32 0.0, %v268
      %v270 = vpop.f32.mrf.mxu0
      %v271 = vadd.f32 0.0, %v270
      %v272 = vpop.f32.mrf.mxu0
      %v273 = vadd.f32 0.0, %v272
      %v274 = vpop.f32.mrf.mxu0
      %v275 = vadd.f32 0.0, %v274
      %276 = vmatprep.mubr.bf16.mxu0 0
      %277 = vmatmul.mubr.bf16.gmra.mxu0 %v222
      %v278 = vpop.f32.mrf.mxu0
      %v279 = vadd.f32 0.0, %v278
      %v280 = vpop.f32.mrf.mxu0
      %v281 = vadd.f32 0.0, %v280
      %v282 = vpop.f32.mrf.mxu0
      %v283 = vadd.f32 0.0, %v282
      %v284 = vpop.f32.mrf.mxu0
      %v285 = vadd.f32 0.0, %v284
      %286 = vmatprep.mubr.bf16.mxu0 0
      %287 = vmatmul.mubr.bf16.gmra.mxu0 %v225
      %v288 = vpop.f32.mrf.mxu0
      %v289 = vadd.f32 0.0, %v288
      %v290 = vpop.f32.mrf.mxu0
      %v291 = vadd.f32 0.0, %v290
      %v292 = vpop.f32.mrf.mxu0
      %v293 = vadd.f32 0.0, %v292
      %v294 = vpop.f32.mrf.mxu0
      %v295 = vadd.f32 0.0, %v294
      %296 = vdwg.mxu0
      %v297 = vpack.c.bf16 %v273, %v269
      %v298 = vpack.c.bf16 %v275, %v271
      %v299 = vpack.c.bf16 %v283, %v279
      %v300 = vpack.c.bf16 %v285, %v281
      %v301 = vpack.c.bf16 %v293, %v289
      %v302 = vpack.c.bf16 %v295, %v291
      %303 = vmatprep.subr.bf16.mxu0 0
      %304 = vmatpush1.bf16.xpose.msra.mxu0 0
      %305 = vmatprep.subr.bf16.mxu0 0
      %306 = vmatpush1.bf16.xpose.msra.mxu0 0
      %307 = vmatprep.subr.bf16.mxu0 0
      %308 = vmatpush1.bf16.xpose.msra.mxu0 0
      %309 = vmatprep.subr.bf16.mxu0 0
      %310 = vmatpush1.bf16.xpose.msra.mxu0 0
      %311 = vmatprep.subr.bf16.mxu0 0
      %312 = vmatpush1.bf16.xpose.msra.mxu0 0
      %313 = vmatprep.subr.bf16.mxu0 0
      %314 = vmatpush1.bf16.xpose.msra.mxu0 0
      %315 = vmatprep.subr.bf16.mxu0 0
      %316 = vmatpush1.bf16.xpose.msra.mxu0 0
      %317 = vmatprep.subr.bf16.mxu0 %v300
      %318 = vmatpush1.bf16.xpose.msra.mxu0 %v299
      %319 = vmatprep.subr.bf16.mxu0 0
      %320 = vmatpush2.bf16.xpose.msra.mxu0 0
      %321 = vmatprep.subr.bf16.mxu0 0
      %322 = vmatpush2.bf16.xpose.msra.mxu0 0
      %323 = vmatprep.subr.bf16.mxu0 0
      %324 = vmatpush2.bf16.xpose.msra.mxu0 0
      %325 = vmatprep.subr.bf16.mxu0 0
      %326 = vmatpush2.bf16.xpose.msra.mxu0 0
      %327 = vmatprep.subr.bf16.mxu0 0
      %328 = vmatpush2.bf16.xpose.msra.mxu0 0
      %329 = vmatprep.subr.bf16.mxu0 0
      %330 = vmatpush2.bf16.xpose.msra.mxu0 0
      %331 = vmatprep.subr.bf16.mxu0 0
      %332 = vmatpush2.bf16.xpose.msra.mxu0 0
      %333 = vmatprep.subr.bf16.mxu0 0
      %334 = vmatpush2.bf16.xpose.msra.mxu0 0
      %335 = vmatprep.mubr.bf16.mxu0 %v298
      %336 = vmatmul.mubr.bf16.gmra.mxu0 %v297
      %v337 = vpop.f32.mrf.mxu0
      %v338 = vadd.f32 0.0, %v337
      %v339 = vpop.f32.mrf.mxu0
      %v340 = vpop.f32.mrf.mxu0
      %v341 = vadd.f32 0.0, %v340
      %v342 = vpop.f32.mrf.mxu0
      %343 = vdwg.mxu0
      %v344 = vmul.f32 %v338, 0.0625
      %v345 = vmul.f32 %v341, 0.0625
      %v346 = vld [vmem:[%s2] sm:$0xff]
      %v347 = vld [vmem:[%s2 + $0x8] sm:$0xff]
      %v348 = vadd.f32 %v344, %v346
      %v349 = vadd.f32 %v345, %v347
      %vm350 = vcmask 130048
      %v351 = vsel %vm350, %v348, -inf
      %352 = vmax.xlane.f32.xlu0 %v351
      %v353 = vpop.xlane.xlu0 %352
      %v354 = vsel %vm350, %v349, -inf
      %355 = vmax.xlane.f32.xlu0 %v354
      %v356 = vpop.xlane.xlu0 %355
      %v357 = vsub.f32 %v348, %v353
      %v358 = vsub.f32 %v349, %v356
      %v359 = vmul.f32 %v357, 1.442695
      %v360 = vpow.pop %v359
      %v361 = vmul.f32 %v358, 1.442695
      %v362 = vpow.pop %v361
      %v363 = vsel %vm350, %v360, 0.0
      %364 = vadd.xlane.f32.xlu0 %v363
      %v365 = vpop.xlane.xlu0 %364
      %v366 = vsel %vm350, %v362, 0.0
      %367 = vadd.xlane.f32.xlu0 %v366
      %v368 = vpop.xlane.xlu0 %367
      %v369 = vrcp.pop %v365
      %v370 = vrcp.pop %v368
      %v371 = vmul.f32 %v360, %v369
      %v372 = vmul.f32 %v362, %v370
      %v373 = vpack.c.bf16 %v372, %v371
      %v375 = vsel %vm350, %v373, 0
      %377 = vmatprep.subr.bf16.mxu0 0
      %378 = vmatpush1.bf16.msra.mxu0 0
      %379 = vmatprep.subr.bf16.mxu0 0
      %380 = vmatpush1.bf16.msra.mxu0 0
      %381 = vmatprep.subr.bf16.mxu0 0
      %382 = vmatpush1.bf16.msra.mxu0 0
      %383 = vmatprep.subr.bf16.mxu0 0
      %384 = vmatpush1.bf16.msra.mxu0 0
      %385 = vmatprep.subr.bf16.mxu0 0
      %386 = vmatpush1.bf16.msra.mxu0 0
      %387 = vmatprep.subr.bf16.mxu0 0
      %388 = vmatpush1.bf16.msra.mxu0 0
      %389 = vmatprep.subr.bf16.mxu0 0
      %390 = vmatpush1.bf16.msra.mxu0 0
      %391 = vmatprep.subr.bf16.mxu0 %v302
      %392 = vmatpush1.bf16.msra.mxu0 %v301
      %393 = vmatprep.subr.bf16.mxu0 0
      %394 = vmatpush2.bf16.msra.mxu0 0
      %395 = vmatprep.subr.bf16.mxu0 0
      %396 = vmatpush2.bf16.msra.mxu0 0
      %397 = vmatprep.subr.bf16.mxu0 0
      %398 = vmatpush2.bf16.msra.mxu0 0
      %399 = vmatprep.subr.bf16.mxu0 0
      %400 = vmatpush2.bf16.msra.mxu0 0
      %401 = vmatprep.subr.bf16.mxu0 0
      %402 = vmatpush2.bf16.msra.mxu0 0
      %403 = vmatprep.subr.bf16.mxu0 0
      %404 = vmatpush2.bf16.msra.mxu0 0
      %405 = vmatprep.subr.bf16.mxu0 0
      %406 = vmatpush2.bf16.msra.mxu0 0
      %407 = vmatprep.subr.bf16.mxu0 0
      %408 = vmatpush2.bf16.msra.mxu0 0
      %409 = vmatprep.mubr.bf16.mxu0 0
      %410 = vmatmul.mubr.bf16.gmra.mxu0 %v375
      %v411 = vpop.f32.mrf.mxu0
      %v412 = vadd.f32 0.0, %v411
      %v413 = vpop.f32.mrf.mxu0
      %v414 = vadd.f32 0.0, %v413
      %v415 = vpop.f32.mrf.mxu0
      %v416 = vadd.f32 0.0, %v415
      %v417 = vpop.f32.mrf.mxu0
      %v418 = vadd.f32 0.0, %v417
      %419 = vdwg.mxu0
      %v420 = vpack.c.bf16 %v416, %v412
      %v421 = vpack.c.bf16 %v418, %v414
      %v424 = vunpack.c.l.b16 %v420
      %v425 = vunpack.c.l.b16 %v421
      %v426 = vunpack.c.h.b16 %v420
      %v427 = vunpack.c.h.b16 %v421
      %v428 = vpack.c.b16 %v425, %v424
      %v429 = vpack.c.b16 %v427, %v426
      %432 = vst [vmem:[%s170] sm:$0xff] %v428
      %433 = vst [vmem:[%s170 + $0x8] sm:$0xff] %v429
      %p434 = scmp.lt.s32.totalorder %s14, 1
      %s435 = scalar_select %p434, %s14, 1
      %s436 = smul.addr %s435, 4
      %s437 = smul.addr %s436, 4
      %s438 = scalar_lea.vmem %s3, %s437
      // Predicated region
      $region33: #{attention_forward.2} parent=31 // pred_check
        %p439 = pneg %p100
      $region34: #{attention_forward.2} parent=31 // pred_check_branch
        %441 = sbr.rel (%p439) target = $region36
      $region35: #{attention_forward.2} parent=31 // pred_region
        _
      $region36: #{attention_forward.2} parent=31 // pred_fallthru
        _
    $region32: #{attention_forward.2} parent=5 // pred_fallthru
      _
    %p442 = scmp.le.s32.totalorder 2, %s9
    // Predicated region
    $region37: #{attention_forward.2} parent=5 // pred_check
      %p443 = pneg %p442
    $region38: #{attention_forward.2} parent=5 // pred_check_branch
      %445 = sbr.rel (%p443) target = $region40
    $region39: #{attention_forward.2} parent=5 // pred_region
      %s446 = ssub.s32 %s9, 2
      // Predicated region
      $region41: #{attention_forward.2} parent=39 // pred_check
        %p447 = pneg %p106
      $region42: #{attention_forward.2} parent=39 // pred_check_branch
        %449 = sbr.rel (%p447) target = $region44
      $region43: #{attention_forward.2} parent=39 // pred_region
        %p450 = scmp.lt.s32.totalorder %s15, 1
        %s451 = scalar_select %p450, %s15, 1
        %s452 = smul.addr %s451, 4
        %s453 = smul.addr %s452, 4
        %s454 = scalar_lea.vmem %s3, %s453
      $region44: #{attention_forward.2} parent=39 // pred_fallthru
        _
    $region40: #{attention_forward.2} parent=5 // pred_fallthru
      _
  $region6: #{attention_forward.2} parent=0 // loop_footer
    %s13 = sadd.s32 1, %s9
  $region7: #{attention_forward.2} parent=0 // loop_footer_branch
    %8 = sbr.rel target = $region3
  $region8: #{attention_forward.2} parent=0 // loop_exit
    _

// kernel: attention_forward.3
$region0: #{attention_forward.3}
  #allocation0 [shape = 'u32[]', space=smem, size = 0x4, offset = 0x4, fixed_abs, tag = 'smem constant byte address 0x4 - core index']
  #allocation1 [shape = 'u32[144,128]{1,0:T(1,128)}', space=vmem, size = 0x12000, scoped, tag = 'internal scratch']
  %s0 = inlined_call_operand.vmem [shape: bf16[2,16,256], index: 0, kind: input, shape index: {}]
  %s1 = inlined_call_operand.vmem [shape: f32[2,8,256], index: 1, kind: input, shape index: {}]
  %s2 = inlined_call_operand.vmem [shape: bf16[8,16], index: 2, kind: input, shape index: {}]
  %s3 = inlined_call_operand.vmem [shape: f32[8,1], index: 3, kind: input, shape index: {}]
  %s4 = inlined_call_operand.vmem [shape: f32[2,8,256], index: 4, kind: output, shape index: {}]
  %s5 = sld [smem:[#allocation0]]
  $region49: #{attention_forward.3} parent=0
    _
  %s7 = ssub.s32 1, %s5
  %s8 = scalar_select 0, %s7, %s5
  loop: start=0, step=1, limit=4
  $region2: #{attention_forward.3} parent=0 // loop_pre_header
    _
  $region3: #{attention_forward.3} parent=0 // loop_header
    %s10 = sphi 0, %s14
    %p11 = scmp.ge.s32.totalorder %s10, 4
    %s20 = sphi 0, %s22
    %s23 = sphi 0, %s20
    %s24 = sphi 0, %s23
    %s40 = sphi 0, %s24
    %s46 = sphi 0, %s48
    %s49 = sphi 0, %s46
    %s50 = sphi 0, %s49
    %s66 = sphi 0, %s50
    %s70 = sphi 0, %s70
    %s72 = sphi 0, %s70
    %s73 = sphi 0, %s72
    %s87 = sphi 0, %s73
    %s91 = sphi 0, %s91
    %s93 = sphi 0, %s91
    %s94 = sphi 0, %s93
    %s108 = sphi 0, %s94
    %s114 = sphi 0, %s116
    %s117 = sphi 0, %s114
    %s118 = sphi 0, %s117
    %s134 = sphi 0, %s118
  $region4: #{attention_forward.3} parent=0 // loop_header_branch
    %13 = sbr.rel (%p11) target = $region8
  $region5: #{attention_forward.3} parent=0 // loop_body
    %s15 = ssub.s32 %s10, 1
    %s16 = ssub.s32 %s10, 2
    %s17 = sadd.s32 %s10, 1
    %s18 = ssub.s32 %s10, %s17
    %p19 = scmp.eq.s32.totalorder %s18, 0
    %s21 = sadd.s32 %s20, 1
    %s22 = scalar_select %p19, %s20, %s21
    %p25 = pneg %p19
    %p26 = scmp.eq.s32.totalorder %s10, 1
    %p27 = por %p25, %p26
    %p28 = scmp.ne.s32.totalorder %s20, %s23
    %p29 = scmp.eq.s32.totalorder %s10, 0
    %p30 = por %p28, %p29
    %p31 = scmp.ne.s32.totalorder %s20, %s23
    %p32 = scmp.eq.s32.totalorder %s15, 1
    %p33 = por %p31, %p32
    %p34 = scmp.ne.s32.totalorder %s23, %s24
    %p35 = scmp.eq.s32.totalorder %s15, 0
    %p36 = por %p34, %p35
    %p37 = scmp.ne.s32.totalorder %s23, %s24
    %p38 = scmp.eq.s32.totalorder %s16, 1
    %p39 = por %p37, %p38
    %p41 = scmp.ne.s32.totalorder %s24, %s40
    %p42 = scmp.eq.s32.totalorder %s16, 0
    %p43 = por %p41, %p42
    %s44 = ssub.s32 %s10, %s17
    %p45 = scmp.eq.s32.totalorder %s44, 0
    %s47 = sadd.s32 %s46, 1
    %s48 = scalar_select %p45, %s46, %s47
    %p51 = pneg %p45
    %p52 = scmp.eq.s32.totalorder %s10, 1
    %p53 = por %p51, %p52
    %p54 = scmp.ne.s32.totalorder %s46, %s49
    %p55 = scmp.eq.s32.totalorder %s10, 0
    %p56 = por %p54, %p55
    %p57 = scmp.ne.s32.totalorder %s46, %s49
    %p58 = scmp.eq.s32.totalorder %s15, 1
    %p59 = por %p57, %p58
    %p60 = scmp.ne.s32.totalorder %s49, %s50
    %p61 = scmp.eq.s32.totalorder %s15, 0
    %p62 = por %p60, %p61
    %p63 = scmp.ne.s32.totalorder %s49, %s50
    %p64 = scmp.eq.s32.totalorder %s16, 1
    %p65 = por %p63, %p64
    %p67 = scmp.ne.s32.totalorder %s50, %s66
    %p68 = scmp.eq.s32.totalorder %s16, 0
    %p69 = por %p67, %p68
    %s71 = sadd.s32 %s70, 1
    %p74 = scmp.eq.s32.totalorder %s10, 1
    %p75 = scmp.ne.s32.totalorder %s70, %s72
    %p76 = scmp.eq.s32.totalorder %s10, 0
    %p77 = por %p75, %p76
    %p78 = scmp.ne.s32.totalorder %s70, %s72
    %p79 = scmp.eq.s32.totalorder %s15, 1
    %p80 = por %p78, %p79
    %p81 = scmp.ne.s32.totalorder %s72, %s73
    %p82 = scmp.eq.s32.totalorder %s15, 0
    %p83 = por %p81, %p82
    %p84 = scmp.ne.s32.totalorder %s72, %s73
    %p85 = scmp.eq.s32.totalorder %s16, 1
    %p86 = por %p84, %p85
    %p88 = scmp.ne.s32.totalorder %s73, %s87
    %p89 = scmp.eq.s32.totalorder %s16, 0
    %p90 = por %p88, %p89
    %s92 = sadd.s32 %s91, 1
    %p95 = scmp.eq.s32.totalorder %s10, 1
    %p96 = scmp.ne.s32.totalorder %s91, %s93
    %p97 = scmp.eq.s32.totalorder %s10, 0
    %p98 = por %p96, %p97
    %p99 = scmp.ne.s32.totalorder %s91, %s93
    %p100 = scmp.eq.s32.totalorder %s15, 1
    %p101 = por %p99, %p100
    %p102 = scmp.ne.s32.totalorder %s93, %s94
    %p103 = scmp.eq.s32.totalorder %s15, 0
    %p104 = por %p102, %p103
    %p105 = scmp.ne.s32.totalorder %s93, %s94
    %p106 = scmp.eq.s32.totalorder %s16, 1
    %p107 = por %p105, %p106
    %p109 = scmp.ne.s32.totalorder %s94, %s108
    %p110 = scmp.eq.s32.totalorder %s16, 0
    %p111 = por %p109, %p110
    %s112 = ssub.s32 %s10, %s17
    %p113 = scmp.eq.s32.totalorder %s112, 0
    %s115 = sadd.s32 %s114, 1
    %s116 = scalar_select %p113, %s114, %s115
    %p119 = pneg %p113
    %p120 = scmp.eq.s32.totalorder %s10, 1
    %p121 = por %p119, %p120
    %p122 = scmp.ne.s32.totalorder %s114, %s117
    %p123 = scmp.eq.s32.totalorder %s10, 0
    %p124 = por %p122, %p123
    %p125 = scmp.ne.s32.totalorder %s114, %s117
    %p126 = scmp.eq.s32.totalorder %s15, 1
    %p127 = por %p125, %p126
    %p128 = scmp.ne.s32.totalorder %s117, %s118
    %p129 = scmp.eq.s32.totalorder %s15, 0
    %p130 = por %p128, %p129
    %p131 = scmp.ne.s32.totalorder %s117, %s118
    %p132 = scmp.eq.s32.totalorder %s16, 1
    %p133 = por %p131, %p132
    %p135 = scmp.ne.s32.totalorder %s118, %s134
    %p136 = scmp.eq.s32.totalorder %s16, 0
    %p137 = por %p135, %p136
    %p138 = scmp.le.s32.totalorder 1, %s10
    %p139 = scmp.lt.s32.totalorder %s10, 3
    %p140 = pnand %p138, %p139
    %p141 = pneg %p140
    // Predicated region
    $region9: #{attention_forward.3} parent=5 // pred_check
      _
    $region10: #{attention_forward.3} parent=5 // pred_check_branch
      %143 = sbr.rel (%p140) target = $region12
    $region11: #{attention_forward.3} parent=5 // pred_region
      %s144 = ssub.s32 %s10, 1
      // Predicated region
      $region13: #{attention_forward.3} parent=11 // pred_check
        %p145 = pneg %p83
      $region14: #{attention_forward.3} parent=11 // pred_check_branch
        %147 = sbr.rel (%p145) target = $region16
      $region15: #{attention_forward.3} parent=11 // pred_region
        _
      $region16: #{attention_forward.3} parent=11 // pred_fallthru
        _
      // Predicated region
      $region17: #{attention_forward.3} parent=11 // pred_check
        %p148 = pneg %p104
      $region18: #{attention_forward.3} parent=11 // pred_check_branch
        %150 = sbr.rel (%p148) target = $region20
      $region19: #{attention_forward.3} parent=11 // pred_region
        _
      $region20: #{attention_forward.3} parent=11 // pred_fallthru
        _
    $region12: #{attention_forward.3} parent=5 // pred_fallthru
      _
    %p151 = scmp.lt.s32.totalorder %s10, 2
    // Predicated region
    $region21: #{attention_forward.3} parent=5 // pred_check
      %p152 = pneg %p151
    $region22: #{attention_forward.3} parent=5 // pred_check_branch
      %154 = sbr.rel (%p152) target = $region24
    $region23: #{attention_forward.3} parent=5 // pred_region
      // Predicated region
      $region25: #{attention_forward.3} parent=23 // pred_check
        %p155 = pneg %p30
      $region26: #{attention_forward.3} parent=23 // pred_check_branch
        %157 = sbr.rel (%p155) target = $region28
      $region27: #{attention_forward.3} parent=23 // pred_region
        %p158 = scmp.lt.s32.totalorder %s10, 1
        %s159 = scalar_select %p158, %s10, 1
        %s160 = smul.addr %s159, 4
        %s161 = smul.addr %s160, 4
        %s162 = scalar_lea.vmem %s0, %s161
      $region28: #{attention_forward.3} parent=23 // pred_fallthru
        _
      // Predicated region
      $region29: #{attention_forward.3} parent=23 // pred_check
        %p163 = pneg %p56
      $region30: #{attention_forward.3} parent=23 // pred_check_branch
        %165 = sbr.rel (%p163) target = $region32
      $region31: #{attention_forward.3} parent=23 // pred_region
        %p166 = scmp.lt.s32.totalorder %s10, 1
        %s167 = scalar_select %p166, %s10, 1
        %s168 = smul.addr %s167, 2
        %s169 = smul.addr %s168, 8
        %s170 = scalar_lea.vmem %s1, %s169
      $region32: #{attention_forward.3} parent=23 // pred_fallthru
        _
    $region24: #{attention_forward.3} parent=5 // pred_fallthru
      _
    %p171 = scmp.le.s32.totalorder 1, %s10
    %p172 = scmp.lt.s32.totalorder %s10, 3
    %p173 = pnand %p171, %p172
    %p174 = pneg %p173
    // Predicated region
    $region33: #{attention_forward.3} parent=5 // pred_check
      _
    $region34: #{attention_forward.3} parent=5 // pred_check_branch
      %176 = sbr.rel (%p173) target = $region36
    $region35: #{attention_forward.3} parent=5 // pred_region
      %s177 = ssub.s32 %s10, 1
      %p178 = scmp.lt.s32.totalorder %s15, 1
      %s179 = scalar_select %p178, %s15, 1
      %s180 = smul.addr %s179, 4
      %s181 = smul.addr %s180, 4
      %s182 = scalar_lea.vmem %s0, %s181
      %p183 = pneg %p36
      %p184 = pneg %p33
      %p185 = scmp.lt.s32.totalorder %s15, 1
      %s186 = scalar_select %p185, %s15, 1
      %s187 = smul.addr %s186, 2
      %s188 = smul.addr %s187, 8
      %s189 = scalar_lea.vmem %s1, %s188
      %p190 = pneg %p62
      %p191 = pneg %p59
      %p192 = pneg %p83
      %p193 = pneg %p80
      %p194 = pneg %p104
      %p195 = pneg %p101
      %p196 = pneg %p130
      %p197 = pneg %p127
      %p198 = scmp.lt.s32.totalorder %s15, 1
      %s199 = scalar_select %p198, %s15, 1
      %s200 = smul.addr %s199, 2
      %s201 = smul.addr %s200, 8
      %s202 = scalar_lea.vmem %s4, %s201
      %p203 = scmp.lt.s32.totalorder %s15, 1
      %s204 = scalar_select %p203, %s15, 1
      %s205 = smul.addr %s204, 4
      %s206 = smul.addr %s205, 4
      %s207 = scalar_lea.vmem %s0, %s206
      %p208 = scmp.lt.s32.totalorder %s15, 1
      %s209 = scalar_select %p208, %s15, 1
      %s210 = smul.addr %s209, 2
      %s211 = smul.addr %s210, 8
      %s212 = scalar_lea.vmem %s1, %s211
      %p213 = scmp.lt.s32.totalorder %s15, 1
      %s214 = scalar_select %p213, %s15, 1
      %s215 = smul.addr %s214, 2
      %s216 = smul.addr %s215, 8
      %s217 = scalar_lea.vmem %s4, %s216
      %v219 = vld [vmem:[%s207] sm:$0xff]
      %v220 = vld [vmem:[%s207 + $0x8] sm:$0xff]
      %v221 = vld [vmem:[%s2] sm:$0xf]
      %v222 = vld [vmem:[%s3] sm:$0xff]
      %224 = vset.pattern.permute.xlu0 0
      %225 = vperm.xlu0 %224, %v222
      %v226 = vpop.permute.xlu0 %225
      %v230 = vunpack.c.l.b16 %v219
      %v231 = vunpack.c.h.b16 %v219
      %v232 = vunpack.c.l.b16 %v220
      %v233 = vunpack.c.h.b16 %v220
      %v234 = vpack.c.b16 %v232, %v230
      %v235 = vpack.c.b16 %v233, %v231
      %vm238 = vcmask 130048
      %v240 = vsel %vm238, %v221, 0
      %242 = vmatprep.subr.bf16.mxu0 0
      %243 = vmatpush1.bf16.msra.mxu0 0
      %244 = vmatprep.subr.bf16.mxu0 0
      %245 = vmatpush1.bf16.msra.mxu0 0
      %246 = vmatprep.subr.bf16.mxu0 0
      %247 = vmatpush1.bf16.msra.mxu0 0
      %248 = vmatprep.subr.bf16.mxu0 0
      %249 = vmatpush1.bf16.msra.mxu0 0
      %250 = vmatprep.subr.bf16.mxu0 0
      %251 = vmatpush1.bf16.msra.mxu0 0
      %252 = vmatprep.subr.bf16.mxu0 0
      %253 = vmatpush1.bf16.msra.mxu0 0
      %254 = vmatprep.subr.bf16.mxu0 0
      %255 = vmatpush1.bf16.msra.mxu0 0
      %256 = vmatprep.subr.bf16.mxu0 %v235
      %257 = vmatpush1.bf16.msra.mxu0 %v234
      %258 = vmatprep.subr.bf16.mxu0 0
      %259 = vmatpush2.bf16.msra.mxu0 0
      %260 = vmatprep.subr.bf16.mxu0 0
      %261 = vmatpush2.bf16.msra.mxu0 0
      %262 = vmatprep.subr.bf16.mxu0 0
      %263 = vmatpush2.bf16.msra.mxu0 0
      %264 = vmatprep.subr.bf16.mxu0 0
      %265 = vmatpush2.bf16.msra.mxu0 0
      %266 = vmatprep.subr.bf16.mxu0 0
      %267 = vmatpush2.bf16.msra.mxu0 0
      %268 = vmatprep.subr.bf16.mxu0 0
      %269 = vmatpush2.bf16.msra.mxu0 0
      %270 = vmatprep.subr.bf16.mxu0 0
      %271 = vmatpush2.bf16.msra.mxu0 0
      %272 = vmatprep.subr.bf16.mxu0 0
      %273 = vmatpush2.bf16.msra.mxu0 0
      %274 = vmatprep.mubr.bf16.mxu0 0
      %275 = vmatmul.mubr.bf16.gmra.mxu0 %v240
      %v276 = vpop.f32.mrf.mxu0
      %v277 = vadd.f32 %v226, %v276
      %v278 = vpop.f32.mrf.mxu0
      %v279 = vadd.f32 %v226, %v278
      %v280 = vpop.f32.mrf.mxu0
      %v281 = vpop.f32.mrf.mxu0
      %282 = vdwg.mxu0
      %v283 = vld [vmem:[%s212] sm:$0xff]
      %v284 = vld [vmem:[%s212 + $0x8] sm:$0xff]
      %v285 = vadd.f32 %v277, %v283
      %v286 = vadd.f32 %v279, %v284
      %287 = vst [vmem:[%s217] sm:$0xff] %v285
      %288 = vst [vmem:[%s217 + $0x8] sm:$0xff] %v286
      %p289 = scmp.lt.s32.totalorder %s15, 1
      %s290 = scalar_select %p289, %s15, 1
      %s291 = smul.addr %s290, 2
      %s292 = smul.addr %s291, 8
      %s293 = scalar_lea.vmem %s4, %s292
      // Predicated region
      $region37: #{attention_forward.3} parent=35 // pred_check
        %p294 = pneg %p127
      $region38: #{attention_forward.3} parent=35 // pred_check_branch
        %296 = sbr.rel (%p294) target = $region40
      $region39: #{attention_forward.3} parent=35 // pred_region
        _
      $region40: #{attention_forward.3} parent=35 // pred_fallthru
        _
    $region36: #{attention_forward.3} parent=5 // pred_fallthru
      _
    %p297 = scmp.le.s32.totalorder 2, %s10
    // Predicated region
    $region41: #{attention_forward.3} parent=5 // pred_check
      %p298 = pneg %p297
    $region42: #{attention_forward.3} parent=5 // pred_check_branch
      %300 = sbr.rel (%p298) target = $region44
    $region43: #{attention_forward.3} parent=5 // pred_region
      %s301 = ssub.s32 %s10, 2
      // Predicated region
      $region45: #{attention_forward.3} parent=43 // pred_check
        %p302 = pneg %p133
      $region46: #{attention_forward.3} parent=43 // pred_check_branch
        %304 = sbr.rel (%p302) target = $region48
      $region47: #{attention_forward.3} parent=43 // pred_region
        %p305 = scmp.lt.s32.totalorder %s16, 1
        %s306 = scalar_select %p305, %s16, 1
        %s307 = smul.addr %s306, 2
        %s308 = smul.addr %s307, 8
        %s309 = scalar_lea.vmem %s4, %s308
      $region48: #{attention_forward.3} parent=43 // pred_fallthru
        _
    $region44: #{attention_forward.3} parent=5 // pred_fallthru
      _
  $region6: #{attention_forward.3} parent=0 // loop_footer
    %s14 = sadd.s32 1, %s10
  $region7: #{attention_forward.3} parent=0 // loop_footer_branch
    %9 = sbr.rel target = $region3
  $region8: #{attention_forward.3} parent=0 // loop_exit
    _

</llo_original>
